<compile_context>
chip_gen: v5e
topology: v5e:2x2
jax: 0.10.0
libtpu: 0.0.40
codegen_flags: <defaults>
</compile_context>

<pallas_src>
import functools

import jax
import jax.numpy as jnp
from jax.experimental import pallas as pl
from jax.experimental.pallas import tpu as pltpu


def _keypoint_encoder_kernel(kpts_ref, *refs, num_layers, eps):
    o_ref = refs[-1]                       # (feature_dim, N)  -- batch dim squeezed
    wb = refs[:-1]                         # (W0^T, b0, W1^T, b1, ..., W_{L-1}^T, b_{L-1})

    h = kpts_ref[...]                      # (N, 4) channel-last, one sample
    for i in range(num_layers):            # static Python loop; tiny fixed depth
        w = wb[2 * i][...]                 # (C_in_i, C_out_i), pre-transposed in wrapper
        b = wb[2 * i + 1][...]             # (1, C_out_i)
        h = jnp.dot(h, w, preferred_element_type=jnp.float32) + b
        if i < num_layers - 1:
            # InstanceNorm1d: per-(sample, channel) stats over the length axis (axis 0),
            # biased variance, eps=1e-5, no affine.  Single sweep: var = E[x^2] - E[x]^2.
            mean = jnp.mean(h, axis=0, keepdims=True)
            mean_sq = jnp.mean(h * h, axis=0, keepdims=True)
            var = mean_sq - mean * mean
            h = (h - mean) * jax.lax.rsqrt(var + eps)
            h = jnp.maximum(h, 0.0)        # ReLU

    # Fold the module's NCL transpose into the kernel: (N, feature_dim) -> (feature_dim, N).
    # Length axis becomes the lane axis => lane-dense output stores at production N.
    o_ref[...] = jnp.transpose(h, (1, 0)).astype(o_ref.dtype)


def prepare_params(params):
    """One-time parameter prep (hoisted out of the per-call path): transpose each
    1x1 conv weight (C_out, C_in) -> (C_in, C_out) and reshape biases to (1, C_out)."""
    prepped = []
    for W, b in zip(params['Ws'], params['bs']):
        prepped.append(jnp.asarray(W).T)
        prepped.append(jnp.asarray(b).reshape(1, -1))
    return tuple(prepped)


def keypoint_encoder(kpts, prepped_params, feature_dim):
    """kpts: (B, N, 4) as taken by the PyTorch module.  Returns (B, feature_dim, N)."""
    B, N, Cin = kpts.shape
    num_layers = len(prepped_params) // 2

    kernel = functools.partial(
        _keypoint_encoder_kernel, num_layers=num_layers, eps=1e-5,
    )

    # One sample per grid step (InstanceNorm stats need the full length axis).
    in_specs = [pl.BlockSpec((None, N, Cin), lambda b: (b, 0, 0))]
    for p in prepped_params:
        # Weights/biases: constant block index across the grid -> DMA'd once, stay resident.
        in_specs.append(pl.BlockSpec(p.shape, lambda b: (0, 0)))

    out_spec = pl.BlockSpec((None, feature_dim, N), lambda b: (b, 0, 0))

    out = pl.pallas_call(
        kernel,
        out_shape=jax.ShapeDtypeStruct((B, feature_dim, N), kpts.dtype),
        grid_spec=pltpu.PrefetchScalarGridSpec(
            num_scalar_prefetch=0,
            grid=(B,),
            in_specs=in_specs,
            out_specs=out_spec,
        ),
        # Batch axis is independent -> "parallel" lets v7x's 2 TensorCores split it
        # (neutral on v5e/v6e).
        compiler_params=pltpu.CompilerParams(dimension_semantics=("parallel",)),
    )(kpts, *prepped_params)

    return out  # (B, feature_dim, N) -- NCL layout, no wrapper transpose needed


def reference(kpts, params):
    """Pure-JAX reference mirroring the PyTorch module exactly (NCL layout)."""
    x = jnp.transpose(kpts, (0, 2, 1))     # (B, 4, N)
    L = len(params['Ws'])
    for i in range(L):
        W, b = params['Ws'][i], params['bs'][i]
        x = jnp.einsum('oi,bil->bol', W, x) + b[None, :, None]
        if i < L - 1:
            mean = jnp.mean(x, axis=2, keepdims=True)
            var = jnp.mean((x - mean) ** 2, axis=2, keepdims=True)
            x = (x - mean) / jnp.sqrt(var + 1e-5)
            x = jnp.maximum(x, 0.0)
    return x                               # (B, feature_dim, N)


if __name__ == "__main__":
    B, N = 2, 16                           # batch, number of keypoints
    layers = [32, 64]
    feature_dim = 32
    channels = [4] + layers + [feature_dim]
    num_layers = len(channels) - 1

    key = jax.random.PRNGKey(0)
    keys = jax.random.split(key, 2 * num_layers + 1)

    Ws, bs = [], []
    for i in range(1, len(channels)):
        kW, kb = keys[2 * (i - 1)], keys[2 * (i - 1) + 1]
        Ws.append(0.3 * jax.random.normal(kW, (channels[i], channels[i - 1]), jnp.float32))
        if i == len(channels) - 1:
            bs.append(jnp.zeros((channels[i],), jnp.float32))   # last-layer bias init to 0
        else:
            bs.append(0.3 * jax.random.normal(kb, (channels[i],), jnp.float32))
    params = {'Ws': Ws, 'bs': bs}

    kpts = jax.random.normal(keys[-1], (B, N, 4), jnp.float32)

    prepped = prepare_params(params)        # one-time weight prep (hoisted out of call path)
    out = keypoint_encoder(kpts, prepped, feature_dim)
    out = jax.block_until_ready(out)

    ref = reference(kpts, params)
    assert out.shape == (B, feature_dim, N)
    err = float(jnp.max(jnp.abs(out - ref)))
    if err < 1e-3:
        print("KERNEL_OK")
    else:
        print(f"MISMATCH max_abs_err={err}")
</pallas_src>

<mosaic_0001>
module attributes {stable_mosaic.version = 11 : i64} {
  func.func @_keypoint_encoder_kernel(%arg0: i32, %arg1: memref<1x16x4xf32, #tpu.memory_space<vmem>>, %arg2: memref<4x32xf32, #tpu.memory_space<vmem>>, %arg3: memref<1x32xf32, #tpu.memory_space<vmem>>, %arg4: memref<32x64xf32, #tpu.memory_space<vmem>>, %arg5: memref<1x64xf32, #tpu.memory_space<vmem>>, %arg6: memref<64x32xf32, #tpu.memory_space<vmem>>, %arg7: memref<1x32xf32, #tpu.memory_space<vmem>>, %arg8: memref<1x32x16xf32, #tpu.memory_space<vmem>>) attributes {dimension_semantics = [#tpu.dimension_semantics<parallel>], iteration_bounds = array<i64: 2>, scalar_prefetch = 0 : i64, scratch_operands = 0 : i64, tpu.core_type = #tpu.core_type<tc>, window_params = [{transform_indices = @transform_0, window_bounds = array<i64: 1, 16, 4>}, {pipeline_mode = #tpu.pipeline_mode<synchronous>, transform_indices = @transform_1, window_bounds = array<i64: 4, 32>}, {pipeline_mode = #tpu.pipeline_mode<synchronous>, transform_indices = @transform_2, window_bounds = array<i64: 1, 32>}, {pipeline_mode = #tpu.pipeline_mode<synchronous>, transform_indices = @transform_3, window_bounds = array<i64: 32, 64>}, {pipeline_mode = #tpu.pipeline_mode<synchronous>, transform_indices = @transform_4, window_bounds = array<i64: 1, 64>}, {pipeline_mode = #tpu.pipeline_mode<synchronous>, transform_indices = @transform_5, window_bounds = array<i64: 64, 32>}, {pipeline_mode = #tpu.pipeline_mode<synchronous>, transform_indices = @transform_6, window_bounds = array<i64: 1, 32>}, {transform_indices = @transform_7, window_bounds = array<i64: 1, 32, 16>}]} {
    %c0 = arith.constant 0 : index
    %c0_0 = arith.constant 0 : index
    %c0_1 = arith.constant 0 : index
    %0 = vector.load %arg1[%c0, %c0_0, %c0_1] : memref<1x16x4xf32, #tpu.memory_space<vmem>>, vector<1x16x4xf32>
    %1 = vector.shape_cast %0 : vector<1x16x4xf32> to vector<16x4xf32>
    %c0_2 = arith.constant 0 : index
    %c0_3 = arith.constant 0 : index
    %2 = vector.load %arg2[%c0_2, %c0_3] : memref<4x32xf32, #tpu.memory_space<vmem>>, vector<4x32xf32>
    %c0_4 = arith.constant 0 : index
    %c0_5 = arith.constant 0 : index
    %3 = vector.load %arg3[%c0_4, %c0_5] : memref<1x32xf32, #tpu.memory_space<vmem>>, vector<1x32xf32>
    %cst = arith.constant dense<0.000000e+00> : vector<16x32xf32>
    %4 = tpu.matmul %1, %2, %cst {dimension_numbers = #tpu.dot_dimension_numbers<[1], [0], [0], [1], [0, 0, 1, 1], [], []>} : vector<16x4xf32>, vector<4x32xf32>, vector<16x32xf32> -> vector<16x32xf32>
    %5 = vector.broadcast %3 : vector<1x32xf32> to vector<16x32xf32>
    %6 = arith.addf %4, %5 : vector<16x32xf32>
    %cst_6 = arith.constant dense<0.000000e+00> : vector<32xf32>
    %7 = vector.multi_reduction <add>, %6, %cst_6 [0] : vector<16x32xf32> to vector<32xf32>
    %8 = vector.shape_cast %7 : vector<32xf32> to vector<1x32xf32>
    %cst_7 = arith.constant 1.600000e+01 : f32
    %9 = vector.broadcast %cst_7 : f32 to vector<1x32xf32>
    %10 = arith.divf %8, %9 : vector<1x32xf32>
    %11 = arith.mulf %6, %6 : vector<16x32xf32>
    %cst_8 = arith.constant dense<0.000000e+00> : vector<32xf32>
    %12 = vector.multi_reduction <add>, %11, %cst_8 [0] : vector<16x32xf32> to vector<32xf32>
    %13 = vector.shape_cast %12 : vector<32xf32> to vector<1x32xf32>
    %cst_9 = arith.constant 1.600000e+01 : f32
    %14 = vector.broadcast %cst_9 : f32 to vector<1x32xf32>
    %15 = arith.divf %13, %14 : vector<1x32xf32>
    %16 = arith.mulf %10, %10 : vector<1x32xf32>
    %17 = arith.subf %15, %16 : vector<1x32xf32>
    %18 = vector.broadcast %10 : vector<1x32xf32> to vector<16x32xf32>
    %19 = arith.subf %6, %18 : vector<16x32xf32>
    %cst_10 = arith.constant 9.99999974E-6 : f32
    %20 = vector.broadcast %cst_10 : f32 to vector<1x32xf32>
    %21 = arith.addf %17, %20 : vector<1x32xf32>
    %22 = math.rsqrt %21 : vector<1x32xf32>
    %23 = vector.broadcast %22 : vector<1x32xf32> to vector<16x32xf32>
    %24 = arith.mulf %19, %23 : vector<16x32xf32>
    %cst_11 = arith.constant 0.000000e+00 : f32
    %25 = vector.broadcast %cst_11 : f32 to vector<16x32xf32>
    %26 = arith.maximumf %24, %25 : vector<16x32xf32>
    %c0_12 = arith.constant 0 : index
    %c0_13 = arith.constant 0 : index
    %27 = vector.load %arg4[%c0_12, %c0_13] : memref<32x64xf32, #tpu.memory_space<vmem>>, vector<32x64xf32>
    %c0_14 = arith.constant 0 : index
    %c0_15 = arith.constant 0 : index
    %28 = vector.load %arg5[%c0_14, %c0_15] : memref<1x64xf32, #tpu.memory_space<vmem>>, vector<1x64xf32>
    %cst_16 = arith.constant dense<0.000000e+00> : vector<16x64xf32>
    %29 = tpu.matmul %26, %27, %cst_16 {dimension_numbers = #tpu.dot_dimension_numbers<[1], [0], [0], [1], [0, 0, 1, 1], [], []>} : vector<16x32xf32>, vector<32x64xf32>, vector<16x64xf32> -> vector<16x64xf32>
    %30 = vector.broadcast %28 : vector<1x64xf32> to vector<16x64xf32>
    %31 = arith.addf %29, %30 : vector<16x64xf32>
    %cst_17 = arith.constant dense<0.000000e+00> : vector<64xf32>
    %32 = vector.multi_reduction <add>, %31, %cst_17 [0] : vector<16x64xf32> to vector<64xf32>
    %33 = vector.shape_cast %32 : vector<64xf32> to vector<1x64xf32>
    %cst_18 = arith.constant 1.600000e+01 : f32
    %34 = vector.broadcast %cst_18 : f32 to vector<1x64xf32>
    %35 = arith.divf %33, %34 : vector<1x64xf32>
    %36 = arith.mulf %31, %31 : vector<16x64xf32>
    %cst_19 = arith.constant dense<0.000000e+00> : vector<64xf32>
    %37 = vector.multi_reduction <add>, %36, %cst_19 [0] : vector<16x64xf32> to vector<64xf32>
    %38 = vector.shape_cast %37 : vector<64xf32> to vector<1x64xf32>
    %cst_20 = arith.constant 1.600000e+01 : f32
    %39 = vector.broadcast %cst_20 : f32 to vector<1x64xf32>
    %40 = arith.divf %38, %39 : vector<1x64xf32>
    %41 = arith.mulf %35, %35 : vector<1x64xf32>
    %42 = arith.subf %40, %41 : vector<1x64xf32>
    %43 = vector.broadcast %35 : vector<1x64xf32> to vector<16x64xf32>
    %44 = arith.subf %31, %43 : vector<16x64xf32>
    %cst_21 = arith.constant 9.99999974E-6 : f32
    %45 = vector.broadcast %cst_21 : f32 to vector<1x64xf32>
    %46 = arith.addf %42, %45 : vector<1x64xf32>
    %47 = math.rsqrt %46 : vector<1x64xf32>
    %48 = vector.broadcast %47 : vector<1x64xf32> to vector<16x64xf32>
    %49 = arith.mulf %44, %48 : vector<16x64xf32>
    %cst_22 = arith.constant 0.000000e+00 : f32
    %50 = vector.broadcast %cst_22 : f32 to vector<16x64xf32>
    %51 = arith.maximumf %49, %50 : vector<16x64xf32>
    %c0_23 = arith.constant 0 : index
    %c0_24 = arith.constant 0 : index
    %52 = vector.load %arg6[%c0_23, %c0_24] : memref<64x32xf32, #tpu.memory_space<vmem>>, vector<64x32xf32>
    %c0_25 = arith.constant 0 : index
    %c0_26 = arith.constant 0 : index
    %53 = vector.load %arg7[%c0_25, %c0_26] : memref<1x32xf32, #tpu.memory_space<vmem>>, vector<1x32xf32>
    %cst_27 = arith.constant dense<0.000000e+00> : vector<16x32xf32>
    %54 = tpu.matmul %51, %52, %cst_27 {dimension_numbers = #tpu.dot_dimension_numbers<[1], [0], [0], [1], [0, 0, 1, 1], [], []>} : vector<16x64xf32>, vector<64x32xf32>, vector<16x32xf32> -> vector<16x32xf32>
    %55 = vector.broadcast %53 : vector<1x32xf32> to vector<16x32xf32>
    %56 = arith.addf %54, %55 : vector<16x32xf32>
    %57 = tpu.transpose %56, [1, 0] : vector<16x32xf32> -> vector<32x16xf32>
    %c0_28 = arith.constant 0 : index
    %c0_29 = arith.constant 0 : index
    %c0_30 = arith.constant 0 : index
    %58 = vector.load %arg8[%c0_28, %c0_29, %c0_30] : memref<1x32x16xf32, #tpu.memory_space<vmem>>, vector<1x32x16xf32>
    %59 = vector.shape_cast %58 : vector<1x32x16xf32> to vector<32x16xf32>
    %60 = vector.shape_cast %57 : vector<32x16xf32> to vector<1x32x16xf32>
    tpu.vector_store %arg8[%c0_28, %c0_29, %c0_30], %60 {strides = array<i32>} : memref<1x32x16xf32, #tpu.memory_space<vmem>>, vector<1x32x16xf32>,
    return
  }
  func.func @transform_0(%arg0: i32) -> (i32, i32, i32) {
    %c0_i32 = arith.constant 0 : i32
    %c0_i32_0 = arith.constant 0 : i32
    %c0_i32_1 = arith.constant 0 : i32
    return %arg0, %c0_i32, %c0_i32_0 : i32, i32, i32
  }
  func.func @transform_1(%arg0: i32) -> (i32, i32) {
    %c0_i32 = arith.constant 0 : i32
    %c0_i32_0 = arith.constant 0 : i32
    %c0_i32_1 = arith.constant 0 : i32
    return %c0_i32, %c0_i32_0 : i32, i32
  }
  func.func @transform_2(%arg0: i32) -> (i32, i32) {
    %c0_i32 = arith.constant 0 : i32
    %c0_i32_0 = arith.constant 0 : i32
    %c0_i32_1 = arith.constant 0 : i32
    return %c0_i32, %c0_i32_0 : i32, i32
  }
  func.func @transform_3(%arg0: i32) -> (i32, i32) {
    %c0_i32 = arith.constant 0 : i32
    %c0_i32_0 = arith.constant 0 : i32
    %c0_i32_1 = arith.constant 0 : i32
    return %c0_i32, %c0_i32_0 : i32, i32
  }
  func.func @transform_4(%arg0: i32) -> (i32, i32) {
    %c0_i32 = arith.constant 0 : i32
    %c0_i32_0 = arith.constant 0 : i32
    %c0_i32_1 = arith.constant 0 : i32
    return %c0_i32, %c0_i32_0 : i32, i32
  }
  func.func @transform_5(%arg0: i32) -> (i32, i32) {
    %c0_i32 = arith.constant 0 : i32
    %c0_i32_0 = arith.constant 0 : i32
    %c0_i32_1 = arith.constant 0 : i32
    return %c0_i32, %c0_i32_0 : i32, i32
  }
  func.func @transform_6(%arg0: i32) -> (i32, i32) {
    %c0_i32 = arith.constant 0 : i32
    %c0_i32_0 = arith.constant 0 : i32
    %c0_i32_1 = arith.constant 0 : i32
    return %c0_i32, %c0_i32_0 : i32, i32
  }
  func.func @transform_7(%arg0: i32) -> (i32, i32, i32) {
    %c0_i32 = arith.constant 0 : i32
    %c0_i32_0 = arith.constant 0 : i32
    %c0_i32_1 = arith.constant 0 : i32
    return %arg0, %c0_i32, %c0_i32_0 : i32, i32, i32
  }
}

</mosaic_0001>

<llo_original>
// kernel: tpu_custom_call.1
$region0: #{tpu_custom_call.1}
  #allocation0 [shape = 'u32[]', space=smem, size = 0x4, offset = 0x4, fixed_abs, tag = 'smem constant byte address 0x4 - core index']
  #allocation1 [shape = 'u32[72,128]{1,0:T(1,128)}', space=vmem, size = 0x9000, scoped, tag = 'internal scratch']
  %s0 = inlined_call_operand.vmem [shape: f32[2,16,4], index: 0, kind: input, shape index: {}]
  %s1 = inlined_call_operand.vmem [shape: f32[4,32], index: 1, kind: input, shape index: {}]
  %s2 = inlined_call_operand.vmem [shape: f32[1,32], index: 2, kind: input, shape index: {}]
  %s3 = inlined_call_operand.vmem [shape: f32[32,64], index: 3, kind: input, shape index: {}]
  %s4 = inlined_call_operand.vmem [shape: f32[1,64], index: 4, kind: input, shape index: {}]
  %s5 = inlined_call_operand.vmem [shape: f32[64,32], index: 5, kind: input, shape index: {}]
  %s6 = inlined_call_operand.vmem [shape: f32[1,32], index: 6, kind: input, shape index: {}]
  %s7 = inlined_call_operand.vmem [shape: f32[2,32,16], index: 7, kind: output, shape index: {}]
  %s8 = sld [smem:[#allocation0]]
  $region61: #{tpu_custom_call.1} parent=0
    _
  %s10 = ssub.s32 1, %s8
  %s11 = scalar_select 0, %s10, %s8
  loop: start=0, step=1, limit=4
  $region2: #{tpu_custom_call.1} parent=0 // loop_pre_header
    _
  $region3: #{tpu_custom_call.1} parent=0 // loop_header
    %s13 = sphi 0, %s17
    %p14 = scmp.ge.s32.totalorder %s13, 4
    %s23 = sphi 0, %s25
    %s26 = sphi 0, %s23
    %s27 = sphi 0, %s26
    %s43 = sphi 0, %s27
    %s47 = sphi 0, %s47
    %s49 = sphi 0, %s47
    %s50 = sphi 0, %s49
    %s64 = sphi 0, %s50
    %s68 = sphi 0, %s68
    %s70 = sphi 0, %s68
    %s71 = sphi 0, %s70
    %s85 = sphi 0, %s71
    %s89 = sphi 0, %s89
    %s91 = sphi 0, %s89
    %s92 = sphi 0, %s91
    %s106 = sphi 0, %s92
    %s110 = sphi 0, %s110
    %s112 = sphi 0, %s110
    %s113 = sphi 0, %s112
    %s127 = sphi 0, %s113
    %s131 = sphi 0, %s131
    %s133 = sphi 0, %s131
    %s134 = sphi 0, %s133
    %s148 = sphi 0, %s134
    %s152 = sphi 0, %s152
    %s154 = sphi 0, %s152
    %s155 = sphi 0, %s154
    %s169 = sphi 0, %s155
    %s175 = sphi 0, %s177
    %s178 = sphi 0, %s175
    %s179 = sphi 0, %s178
    %s195 = sphi 0, %s179
  $region4: #{tpu_custom_call.1} parent=0 // loop_header_branch
    %16 = sbr.rel (%p14) target = $region8
  $region5: #{tpu_custom_call.1} parent=0 // loop_body
    %s18 = ssub.s32 %s13, 1
    %s19 = ssub.s32 %s13, 2
    %s20 = sadd.s32 %s13, 1
    %s21 = ssub.s32 %s13, %s20
    %p22 = scmp.eq.s32.totalorder %s21, 0
    %s24 = sadd.s32 %s23, 1
    %s25 = scalar_select %p22, %s23, %s24
    %p28 = pneg %p22
    %p29 = scmp.eq.s32.totalorder %s13, 1
    %p30 = por %p28, %p29
    %p31 = scmp.ne.s32.totalorder %s23, %s26
    %p32 = scmp.eq.s32.totalorder %s13, 0
    %p33 = por %p31, %p32
    %p34 = scmp.ne.s32.totalorder %s23, %s26
    %p35 = scmp.eq.s32.totalorder %s18, 1
    %p36 = por %p34, %p35
    %p37 = scmp.ne.s32.totalorder %s26, %s27
    %p38 = scmp.eq.s32.totalorder %s18, 0
    %p39 = por %p37, %p38
    %p40 = scmp.ne.s32.totalorder %s26, %s27
    %p41 = scmp.eq.s32.totalorder %s19, 1
    %p42 = por %p40, %p41
    %p44 = scmp.ne.s32.totalorder %s27, %s43
    %p45 = scmp.eq.s32.totalorder %s19, 0
    %p46 = por %p44, %p45
    %s48 = sadd.s32 %s47, 1
    %p51 = scmp.eq.s32.totalorder %s13, 1
    %p52 = scmp.ne.s32.totalorder %s47, %s49
    %p53 = scmp.eq.s32.totalorder %s13, 0
    %p54 = por %p52, %p53
    %p55 = scmp.ne.s32.totalorder %s47, %s49
    %p56 = scmp.eq.s32.totalorder %s18, 1
    %p57 = por %p55, %p56
    %p58 = scmp.ne.s32.totalorder %s49, %s50
    %p59 = scmp.eq.s32.totalorder %s18, 0
    %p60 = por %p58, %p59
    %p61 = scmp.ne.s32.totalorder %s49, %s50
    %p62 = scmp.eq.s32.totalorder %s19, 1
    %p63 = por %p61, %p62
    %p65 = scmp.ne.s32.totalorder %s50, %s64
    %p66 = scmp.eq.s32.totalorder %s19, 0
    %p67 = por %p65, %p66
    %s69 = sadd.s32 %s68, 1
    %p72 = scmp.eq.s32.totalorder %s13, 1
    %p73 = scmp.ne.s32.totalorder %s68, %s70
    %p74 = scmp.eq.s32.totalorder %s13, 0
    %p75 = por %p73, %p74
    %p76 = scmp.ne.s32.totalorder %s68, %s70
    %p77 = scmp.eq.s32.totalorder %s18, 1
    %p78 = por %p76, %p77
    %p79 = scmp.ne.s32.totalorder %s70, %s71
    %p80 = scmp.eq.s32.totalorder %s18, 0
    %p81 = por %p79, %p80
    %p82 = scmp.ne.s32.totalorder %s70, %s71
    %p83 = scmp.eq.s32.totalorder %s19, 1
    %p84 = por %p82, %p83
    %p86 = scmp.ne.s32.totalorder %s71, %s85
    %p87 = scmp.eq.s32.totalorder %s19, 0
    %p88 = por %p86, %p87
    %s90 = sadd.s32 %s89, 1
    %p93 = scmp.eq.s32.totalorder %s13, 1
    %p94 = scmp.ne.s32.totalorder %s89, %s91
    %p95 = scmp.eq.s32.totalorder %s13, 0
    %p96 = por %p94, %p95
    %p97 = scmp.ne.s32.totalorder %s89, %s91
    %p98 = scmp.eq.s32.totalorder %s18, 1
    %p99 = por %p97, %p98
    %p100 = scmp.ne.s32.totalorder %s91, %s92
    %p101 = scmp.eq.s32.totalorder %s18, 0
    %p102 = por %p100, %p101
    %p103 = scmp.ne.s32.totalorder %s91, %s92
    %p104 = scmp.eq.s32.totalorder %s19, 1
    %p105 = por %p103, %p104
    %p107 = scmp.ne.s32.totalorder %s92, %s106
    %p108 = scmp.eq.s32.totalorder %s19, 0
    %p109 = por %p107, %p108
    %s111 = sadd.s32 %s110, 1
    %p114 = scmp.eq.s32.totalorder %s13, 1
    %p115 = scmp.ne.s32.totalorder %s110, %s112
    %p116 = scmp.eq.s32.totalorder %s13, 0
    %p117 = por %p115, %p116
    %p118 = scmp.ne.s32.totalorder %s110, %s112
    %p119 = scmp.eq.s32.totalorder %s18, 1
    %p120 = por %p118, %p119
    %p121 = scmp.ne.s32.totalorder %s112, %s113
    %p122 = scmp.eq.s32.totalorder %s18, 0
    %p123 = por %p121, %p122
    %p124 = scmp.ne.s32.totalorder %s112, %s113
    %p125 = scmp.eq.s32.totalorder %s19, 1
    %p126 = por %p124, %p125
    %p128 = scmp.ne.s32.totalorder %s113, %s127
    %p129 = scmp.eq.s32.totalorder %s19, 0
    %p130 = por %p128, %p129
    %s132 = sadd.s32 %s131, 1
    %p135 = scmp.eq.s32.totalorder %s13, 1
    %p136 = scmp.ne.s32.totalorder %s131, %s133
    %p137 = scmp.eq.s32.totalorder %s13, 0
    %p138 = por %p136, %p137
    %p139 = scmp.ne.s32.totalorder %s131, %s133
    %p140 = scmp.eq.s32.totalorder %s18, 1
    %p141 = por %p139, %p140
    %p142 = scmp.ne.s32.totalorder %s133, %s134
    %p143 = scmp.eq.s32.totalorder %s18, 0
    %p144 = por %p142, %p143
    %p145 = scmp.ne.s32.totalorder %s133, %s134
    %p146 = scmp.eq.s32.totalorder %s19, 1
    %p147 = por %p145, %p146
    %p149 = scmp.ne.s32.totalorder %s134, %s148
    %p150 = scmp.eq.s32.totalorder %s19, 0
    %p151 = por %p149, %p150
    %s153 = sadd.s32 %s152, 1
    %p156 = scmp.eq.s32.totalorder %s13, 1
    %p157 = scmp.ne.s32.totalorder %s152, %s154
    %p158 = scmp.eq.s32.totalorder %s13, 0
    %p159 = por %p157, %p158
    %p160 = scmp.ne.s32.totalorder %s152, %s154
    %p161 = scmp.eq.s32.totalorder %s18, 1
    %p162 = por %p160, %p161
    %p163 = scmp.ne.s32.totalorder %s154, %s155
    %p164 = scmp.eq.s32.totalorder %s18, 0
    %p165 = por %p163, %p164
    %p166 = scmp.ne.s32.totalorder %s154, %s155
    %p167 = scmp.eq.s32.totalorder %s19, 1
    %p168 = por %p166, %p167
    %p170 = scmp.ne.s32.totalorder %s155, %s169
    %p171 = scmp.eq.s32.totalorder %s19, 0
    %p172 = por %p170, %p171
    %s173 = ssub.s32 %s13, %s20
    %p174 = scmp.eq.s32.totalorder %s173, 0
    %s176 = sadd.s32 %s175, 1
    %s177 = scalar_select %p174, %s175, %s176
    %p180 = pneg %p174
    %p181 = scmp.eq.s32.totalorder %s13, 1
    %p182 = por %p180, %p181
    %p183 = scmp.ne.s32.totalorder %s175, %s178
    %p184 = scmp.eq.s32.totalorder %s13, 0
    %p185 = por %p183, %p184
    %p186 = scmp.ne.s32.totalorder %s175, %s178
    %p187 = scmp.eq.s32.totalorder %s18, 1
    %p188 = por %p186, %p187
    %p189 = scmp.ne.s32.totalorder %s178, %s179
    %p190 = scmp.eq.s32.totalorder %s18, 0
    %p191 = por %p189, %p190
    %p192 = scmp.ne.s32.totalorder %s178, %s179
    %p193 = scmp.eq.s32.totalorder %s19, 1
    %p194 = por %p192, %p193
    %p196 = scmp.ne.s32.totalorder %s179, %s195
    %p197 = scmp.eq.s32.totalorder %s19, 0
    %p198 = por %p196, %p197
    %p199 = scmp.le.s32.totalorder 1, %s13
    %p200 = scmp.lt.s32.totalorder %s13, 3
    %p201 = pnand %p199, %p200
    %p202 = pneg %p201
    // Predicated region
    $region9: #{tpu_custom_call.1} parent=5 // pred_check
      _
    $region10: #{tpu_custom_call.1} parent=5 // pred_check_branch
      %204 = sbr.rel (%p201) target = $region12
    $region11: #{tpu_custom_call.1} parent=5 // pred_region
      %s205 = ssub.s32 %s13, 1
      // Predicated region
      $region13: #{tpu_custom_call.1} parent=11 // pred_check
        %p206 = pneg %p60
      $region14: #{tpu_custom_call.1} parent=11 // pred_check_branch
        %208 = sbr.rel (%p206) target = $region16
      $region15: #{tpu_custom_call.1} parent=11 // pred_region
        _
      $region16: #{tpu_custom_call.1} parent=11 // pred_fallthru
        _
      // Predicated region
      $region17: #{tpu_custom_call.1} parent=11 // pred_check
        %p209 = pneg %p81
      $region18: #{tpu_custom_call.1} parent=11 // pred_check_branch
        %211 = sbr.rel (%p209) target = $region20
      $region19: #{tpu_custom_call.1} parent=11 // pred_region
        _
      $region20: #{tpu_custom_call.1} parent=11 // pred_fallthru
        _
      // Predicated region
      $region21: #{tpu_custom_call.1} parent=11 // pred_check
        %p212 = pneg %p102
      $region22: #{tpu_custom_call.1} parent=11 // pred_check_branch
        %214 = sbr.rel (%p212) target = $region24
      $region23: #{tpu_custom_call.1} parent=11 // pred_region
        _
      $region24: #{tpu_custom_call.1} parent=11 // pred_fallthru
        _
      // Predicated region
      $region25: #{tpu_custom_call.1} parent=11 // pred_check
        %p215 = pneg %p123
      $region26: #{tpu_custom_call.1} parent=11 // pred_check_branch
        %217 = sbr.rel (%p215) target = $region28
      $region27: #{tpu_custom_call.1} parent=11 // pred_region
        _
      $region28: #{tpu_custom_call.1} parent=11 // pred_fallthru
        _
      // Predicated region
      $region29: #{tpu_custom_call.1} parent=11 // pred_check
        %p218 = pneg %p144
      $region30: #{tpu_custom_call.1} parent=11 // pred_check_branch
        %220 = sbr.rel (%p218) target = $region32
      $region31: #{tpu_custom_call.1} parent=11 // pred_region
        _
      $region32: #{tpu_custom_call.1} parent=11 // pred_fallthru
        _
      // Predicated region
      $region33: #{tpu_custom_call.1} parent=11 // pred_check
        %p221 = pneg %p165
      $region34: #{tpu_custom_call.1} parent=11 // pred_check_branch
        %223 = sbr.rel (%p221) target = $region36
      $region35: #{tpu_custom_call.1} parent=11 // pred_region
        _
      $region36: #{tpu_custom_call.1} parent=11 // pred_fallthru
        _
    $region12: #{tpu_custom_call.1} parent=5 // pred_fallthru
      _
    %p224 = scmp.lt.s32.totalorder %s13, 2
    // Predicated region
    $region37: #{tpu_custom_call.1} parent=5 // pred_check
      %p225 = pneg %p224
    $region38: #{tpu_custom_call.1} parent=5 // pred_check_branch
      %227 = sbr.rel (%p225) target = $region40
    $region39: #{tpu_custom_call.1} parent=5 // pred_region
      // Predicated region
      $region41: #{tpu_custom_call.1} parent=39 // pred_check
        %p228 = pneg %p33
      $region42: #{tpu_custom_call.1} parent=39 // pred_check_branch
        %230 = sbr.rel (%p228) target = $region44
      $region43: #{tpu_custom_call.1} parent=39 // pred_region
        %p231 = scmp.lt.s32.totalorder %s13, 1
        %s232 = scalar_select %p231, %s13, 1
        %s233 = smul.addr %s232, 2
        %s234 = smul.addr %s233, 8
        %s235 = scalar_lea.vmem %s0, %s234
      $region44: #{tpu_custom_call.1} parent=39 // pred_fallthru
        _
    $region40: #{tpu_custom_call.1} parent=5 // pred_fallthru
      _
    %p236 = scmp.le.s32.totalorder 1, %s13
    %p237 = scmp.lt.s32.totalorder %s13, 3
    %p238 = pnand %p236, %p237
    %p239 = pneg %p238
    // Predicated region
    $region45: #{tpu_custom_call.1} parent=5 // pred_check
      _
    $region46: #{tpu_custom_call.1} parent=5 // pred_check_branch
      %241 = sbr.rel (%p238) target = $region48
    $region47: #{tpu_custom_call.1} parent=5 // pred_region
      %s242 = ssub.s32 %s13, 1
      %p243 = scmp.lt.s32.totalorder %s18, 1
      %s244 = scalar_select %p243, %s18, 1
      %s245 = smul.addr %s244, 2
      %s246 = smul.addr %s245, 8
      %s247 = scalar_lea.vmem %s0, %s246
      %p248 = pneg %p39
      %p249 = pneg %p36
      %p250 = pneg %p60
      %p251 = pneg %p57
      %p252 = pneg %p81
      %p253 = pneg %p78
      %p254 = pneg %p102
      %p255 = pneg %p99
      %p256 = pneg %p123
      %p257 = pneg %p120
      %p258 = pneg %p144
      %p259 = pneg %p141
      %p260 = pneg %p165
      %p261 = pneg %p162
      %p262 = pneg %p191
      %p263 = pneg %p188
      %p264 = scmp.lt.s32.totalorder %s18, 1
      %s265 = scalar_select %p264, %s18, 1
      %s266 = smul.addr %s265, 4
      %s267 = smul.addr %s266, 8
      %s268 = scalar_lea.vmem %s7, %s267
      %p269 = scmp.lt.s32.totalorder %s18, 1
      %s270 = scalar_select %p269, %s18, 1
      %s271 = smul.addr %s270, 2
      %s272 = smul.addr %s271, 8
      %s273 = scalar_lea.vmem %s0, %s272
      %p274 = scmp.lt.s32.totalorder %s18, 1
      %s275 = scalar_select %p274, %s18, 1
      %s276 = smul.addr %s275, 4
      %s277 = smul.addr %s276, 8
      %s278 = scalar_lea.vmem %s7, %s277
      %v279 = vld [vmem:[%s273] sm:$0xff]
      %v280 = vld [vmem:[%s273 + $0x8] sm:$0xff]
      %v281 = vld [vmem:[%s1] sm:$0xf]
      %v282 = vld [vmem:[%s2] sm:$0x1]
      %v284 = vperm.slane %v282, 0
      %vm286 = vcmask 31744
      %v288 = vsel %vm286, %v279, 0
      %v291 = vsel %vm286, %v280, 0
      %vm293 = vcmask 1043456
      %v295 = vsel %vm293, %v281, 0
      %297 = vmatpush.msra.mxu0 0.0
      %298 = vmatpush.msra.mxu0 0.0
      %299 = vmatpush.msra.mxu0 0.0
      %300 = vmatpush.msra.mxu0 0.0
      %301 = vmatpush.msra.mxu0 0.0
      %302 = vmatpush.msra.mxu0 0.0
      %303 = vmatpush.msra.mxu0 0.0
      %304 = vmatpush.msra.mxu0 0.0
      %305 = vmatpush.msra.mxu0 0.0
      %306 = vmatpush.msra.mxu0 0.0
      %307 = vmatpush.msra.mxu0 0.0
      %308 = vmatpush.msra.mxu0 0.0
      %309 = vmatpush.msra.mxu0 0.0
      %310 = vmatpush.msra.mxu0 0.0
      %311 = vmatpush.msra.mxu0 0.0
      %312 = vmatpush.msra.mxu0 %v295
      %313 = vmatmul.f32.gmra.mxu0 %v288
      %v314 = vpop.f32.mrf.mxu0
      %v315 = vadd.f32 %v284, %v314
      %316 = vmatmul.f32.gmra.mxu0 %v291
      %v317 = vpop.f32.mrf.mxu0
      %v318 = vadd.f32 %v284, %v317
      %319 = vdwg.mxu0
      %vm320 = vcmask 261120
      %v321 = vsel %vm320, %v315, 0.0
      %v322 = vsel %vm320, %v318, 0.0
      %v323 = vadd.f32 %v321, %v322
      %v324 = vrot.slane %v323, 4
      %v325 = vadd.f32 %v323, %v324
      %v326 = vrot.slane %v325, 2
      %v327 = vadd.f32 %v325, %v326
      %v328 = vrot.slane %v327, 1
      %v329 = vadd.f32 %v327, %v328
      %v330 = vrcp.pop 16.0
      %v331 = vmul.f32 16.0, %v330
      %v332 = vsub.f32 1.0, %v331
      %v333 = vmul.f32 %v330, %v332
      %v334 = vadd.f32 %v330, %v333
      %vm335 = vweird.f32 %v330
      %v336 = vsel %vm335, %v330, %v334
      %v337 = vmul.f32 %v329, %v336
      %v338 = vmul.f32 %v315, %v315
      %v339 = vmul.f32 %v318, %v318
      %v340 = vsel %vm320, %v338, 0.0
      %v341 = vsel %vm320, %v339, 0.0
      %v342 = vadd.f32 %v340, %v341
      %v343 = vrot.slane %v342, 4
      %v344 = vadd.f32 %v342, %v343
      %v345 = vrot.slane %v344, 2
      %v346 = vadd.f32 %v344, %v345
      %v347 = vrot.slane %v346, 1
      %v348 = vadd.f32 %v346, %v347
      %v349 = vmul.f32 %v348, %v336
      %v350 = vmul.f32 %v337, %v337
      %v351 = vsub.f32 %v349, %v350
      %v352 = vsub.f32 %v315, %v337
      %v353 = vsub.f32 %v318, %v337
      %v354 = vadd.f32 %v351, 1e-05
      %v355 = vrsqrt.pop %v354
      %v356 = vmul.f32 %v355, %v354
      %v357 = vmul.f32 %v356, %v355
      %v358 = vmul.f32 0.5, %v357
      %v359 = vsub.f32 1.5, %v358
      %v360 = vmul.f32 %v355, %v359
      %vm361 = vweird.f32 %v354
      %vm362 = vweird.f32 %v355
      %vm363 = vmor %vm361, %vm362
      %v364 = vsel %vm363, %v355, %v360
      %v365 = vmul.f32 %v352, %v364
      %v366 = vmul.f32 %v353, %v364
      %v367 = vmax.f32 %v365, 0.0
      %v368 = vmax.f32 %v366, 0.0
      %v369 = vld [vmem:[%s3] sm:$0xff]
      %v370 = vld [vmem:[%s3 + $0x8] sm:$0xff]
      %v371 = vld [vmem:[%s3 + $0x10] sm:$0xff]
      %v372 = vld [vmem:[%s3 + $0x18] sm:$0xff]
      %v373 = vld [vmem:[%s4] sm:$0x1]
      %v375 = vperm.slane %v373, 0
      %v378 = vsel %vm320, %v367, 0
      %v381 = vsel %vm320, %v368, 0
      %383 = vmatpush.msra.mxu0 0.0
      %384 = vmatpush.msra.mxu0 0.0
      %385 = vmatpush.msra.mxu0 0.0
      %386 = vmatpush.msra.mxu0 0.0
      %387 = vmatpush.msra.mxu0 0.0
      %388 = vmatpush.msra.mxu0 0.0
      %389 = vmatpush.msra.mxu0 0.0
      %390 = vmatpush.msra.mxu0 0.0
      %391 = vmatpush.msra.mxu0 0.0
      %392 = vmatpush.msra.mxu0 0.0
      %393 = vmatpush.msra.mxu0 0.0
      %394 = vmatpush.msra.mxu0 0.0
      %395 = vmatpush.msra.mxu0 %v372
      %396 = vmatpush.msra.mxu0 %v371
      %397 = vmatpush.msra.mxu0 %v370
      %398 = vmatpush.msra.mxu0 %v369
      %399 = vmatmul.f32.gmra.mxu0 %v378
      %v400 = vpop.f32.mrf.mxu0
      %v401 = vadd.f32 %v375, %v400
      %402 = vmatmul.f32.gmra.mxu0 %v381
      %v403 = vpop.f32.mrf.mxu0
      %v404 = vadd.f32 %v375, %v403
      %405 = vdwg.mxu0
      %vm406 = vcmask 523264
      %v407 = vsel %vm406, %v401, 0.0
      %v408 = vsel %vm406, %v404, 0.0
      %v409 = vadd.f32 %v407, %v408
      %v410 = vrot.slane %v409, 4
      %v411 = vadd.f32 %v409, %v410
      %v412 = vrot.slane %v411, 2
      %v413 = vadd.f32 %v411, %v412
      %v414 = vrot.slane %v413, 1
      %v415 = vadd.f32 %v413, %v414
      %v416 = vmul.f32 %v415, %v336
      %v417 = vmul.f32 %v401, %v401
      %v418 = vmul.f32 %v404, %v404
      %v419 = vsel %vm406, %v417, 0.0
      %v420 = vsel %vm406, %v418, 0.0
      %v421 = vadd.f32 %v419, %v420
      %v422 = vrot.slane %v421, 4
      %v423 = vadd.f32 %v421, %v422
      %v424 = vrot.slane %v423, 2
      %v425 = vadd.f32 %v423, %v424
      %v426 = vrot.slane %v425, 1
      %v427 = vadd.f32 %v425, %v426
      %v428 = vmul.f32 %v427, %v336
      %v429 = vmul.f32 %v416, %v416
      %v430 = vsub.f32 %v428, %v429
      %v431 = vsub.f32 %v401, %v416
      %v432 = vsub.f32 %v404, %v416
      %v433 = vadd.f32 %v430, 1e-05
      %v434 = vrsqrt.pop %v433
      %v435 = vmul.f32 %v434, %v433
      %v436 = vmul.f32 %v435, %v434
      %v437 = vmul.f32 0.5, %v436
      %v438 = vsub.f32 1.5, %v437
      %v439 = vmul.f32 %v434, %v438
      %vm440 = vweird.f32 %v433
      %vm441 = vweird.f32 %v434
      %vm442 = vmor %vm440, %vm441
      %v443 = vsel %vm442, %v434, %v439
      %v444 = vmul.f32 %v431, %v443
      %v445 = vmul.f32 %v432, %v443
      %v446 = vmax.f32 %v444, 0.0
      %v447 = vmax.f32 %v445, 0.0
      %v448 = vld [vmem:[%s5] sm:$0xff]
      %v449 = vld [vmem:[%s5 + $0x8] sm:$0xff]
      %v450 = vld [vmem:[%s5 + $0x10] sm:$0xff]
      %v451 = vld [vmem:[%s5 + $0x18] sm:$0xff]
      %v452 = vld [vmem:[%s5 + $0x20] sm:$0xff]
      %v453 = vld [vmem:[%s5 + $0x28] sm:$0xff]
      %v454 = vld [vmem:[%s5 + $0x30] sm:$0xff]
      %v455 = vld [vmem:[%s5 + $0x38] sm:$0xff]
      %v456 = vld [vmem:[%s6] sm:$0x1]
      %v458 = vperm.slane %v456, 0
      %v461 = vsel %vm406, %v446, 0
      %v464 = vsel %vm406, %v447, 0
      %466 = vmatpush.msra.mxu0 0.0
      %467 = vmatpush.msra.mxu0 0.0
      %468 = vmatpush.msra.mxu0 0.0
      %469 = vmatpush.msra.mxu0 0.0
      %470 = vmatpush.msra.mxu0 0.0
      %471 = vmatpush.msra.mxu0 0.0
      %472 = vmatpush.msra.mxu0 0.0
      %473 = vmatpush.msra.mxu0 0.0
      %474 = vmatpush.msra.mxu0 %v455
      %475 = vmatpush.msra.mxu0 %v454
      %476 = vmatpush.msra.mxu0 %v453
      %477 = vmatpush.msra.mxu0 %v452
      %478 = vmatpush.msra.mxu0 %v451
      %479 = vmatpush.msra.mxu0 %v450
      %480 = vmatpush.msra.mxu0 %v449
      %481 = vmatpush.msra.mxu0 %v448
      %482 = vmatmul.f32.gmra.mxu0 %v461
      %v483 = vpop.f32.mrf.mxu0
      %v484 = vadd.f32 %v458, %v483
      %485 = vmatmul.f32.gmra.mxu0 %v464
      %v486 = vpop.f32.mrf.mxu0
      %v487 = vadd.f32 %v458, %v486
      %488 = vdwg.mxu0
      %489 = vxpose.xlu0.b32.start [1/16] %v484, 128
      %490 = vxpose.xlu0.b32.cont [2/16] %v487, 128
      %491 = vxpose.xlu0.b32.cont [3/16] 0.0, 128
      %492 = vxpose.xlu0.b32.cont [4/16] 0.0, 128
      %493 = vxpose.xlu0.b32.cont [5/16] 0.0, 128
      %494 = vxpose.xlu0.b32.cont [6/16] 0.0, 128
      %495 = vxpose.xlu0.b32.cont [7/16] 0.0, 128
      %496 = vxpose.xlu0.b32.cont [8/16] 0.0, 128
      %497 = vxpose.xlu0.b32.cont [9/16] 0.0, 128
      %498 = vxpose.xlu0.b32.cont [10/16] 0.0, 128
      %499 = vxpose.xlu0.b32.cont [11/16] 0.0, 128
      %500 = vxpose.xlu0.b32.cont [12/16] 0.0, 128
      %501 = vxpose.xlu0.b32.cont [13/16] 0.0, 128
      %502 = vxpose.xlu0.b32.cont [14/16] 0.0, 128
      %503 = vxpose.xlu0.b32.cont [15/16] 0.0, 128
      %504 = vxpose.xlu0.b32.end [16/16] 0.0, 128
      %v505 = vpop.trf.xlu0
      %v506 = vpop.trf.xlu0
      %v507 = vpop.trf.xlu0
      %v508 = vpop.trf.xlu0
      %v509 = vpop.trf.xlu0
      %v510 = vpop.trf.xlu0
      %v511 = vpop.trf.xlu0
      %v512 = vpop.trf.xlu0
      %v513 = vpop.trf.xlu0
      %v514 = vpop.trf.xlu0
      %v515 = vpop.trf.xlu0
      %v516 = vpop.trf.xlu0
      %v517 = vpop.trf.xlu0
      %v518 = vpop.trf.xlu0
      %v519 = vpop.trf.xlu0
      %v520 = vpop.trf.xlu0
      %vm521 = vcmask 130048
      %522 = vst.msk [vmem:[%s278] sm:$0xff] %vm521, %v505
      %523 = vst.msk [vmem:[%s278 + $0x8] sm:$0xff] %vm521, %v506
      %524 = vst.msk [vmem:[%s278 + $0x10] sm:$0xff] %vm521, %v507
      %525 = vst.msk [vmem:[%s278 + $0x18] sm:$0xff] %vm521, %v508
      %p526 = scmp.lt.s32.totalorder %s18, 1
      %s527 = scalar_select %p526, %s18, 1
      %s528 = smul.addr %s527, 4
      %s529 = smul.addr %s528, 8
      %s530 = scalar_lea.vmem %s7, %s529
      // Predicated region
      $region49: #{tpu_custom_call.1} parent=47 // pred_check
        %p531 = pneg %p188
      $region50: #{tpu_custom_call.1} parent=47 // pred_check_branch
        %533 = sbr.rel (%p531) target = $region52
      $region51: #{tpu_custom_call.1} parent=47 // pred_region
        _
      $region52: #{tpu_custom_call.1} parent=47 // pred_fallthru
        _
    $region48: #{tpu_custom_call.1} parent=5 // pred_fallthru
      _
    %p534 = scmp.le.s32.totalorder 2, %s13
    // Predicated region
    $region53: #{tpu_custom_call.1} parent=5 // pred_check
      %p535 = pneg %p534
    $region54: #{tpu_custom_call.1} parent=5 // pred_check_branch
      %537 = sbr.rel (%p535) target = $region56
    $region55: #{tpu_custom_call.1} parent=5 // pred_region
      %s538 = ssub.s32 %s13, 2
      // Predicated region
      $region57: #{tpu_custom_call.1} parent=55 // pred_check
        %p539 = pneg %p194
      $region58: #{tpu_custom_call.1} parent=55 // pred_check_branch
        %541 = sbr.rel (%p539) target = $region60
      $region59: #{tpu_custom_call.1} parent=55 // pred_region
        %p542 = scmp.lt.s32.totalorder %s19, 1
        %s543 = scalar_select %p542, %s19, 1
        %s544 = smul.addr %s543, 4
        %s545 = smul.addr %s544, 8
        %s546 = scalar_lea.vmem %s7, %s545
      $region60: #{tpu_custom_call.1} parent=55 // pred_fallthru
        _
    $region56: #{tpu_custom_call.1} parent=5 // pred_fallthru
      _
  $region6: #{tpu_custom_call.1} parent=0 // loop_footer
    %s17 = sadd.s32 1, %s13
  $region7: #{tpu_custom_call.1} parent=0 // loop_footer_branch
    %12 = sbr.rel target = $region3
  $region8: #{tpu_custom_call.1} parent=0 // loop_exit
    _

</llo_original>
